<compile_context>
chip_gen: v5e
topology: v5e:2x2
jax: 0.10.0
libtpu: 0.0.40
codegen_flags: <defaults>
</compile_context>

<pallas_src>
import math

import numpy as np
import jax
import jax.numpy as jnp
from jax.experimental import pallas as pl
from jax.experimental.pallas import tpu as pltpu


def _round_up(x, m):
    return ((x + m - 1) // m) * m


def _vmem_capacity_bytes():
    """Per-core VMEM capacity; conservative 64 MiB (v7x) fallback."""
    try:
        info = pltpu.get_tpu_info()
        cap = getattr(info, "vmem_capacity_bytes", None)
        if cap:
            return int(cap)
    except Exception:
        pass
    return 64 * 1024 * 1024


def classifier_kernel(x_ref, w_ref, b_ref, o_ref, acc_ref):
    """Partial (TB,TK)x(TK,C_pad) matmul; bias + log-softmax on last K step."""
    k = pl.program_id(1)
    prod = jnp.dot(x_ref[...], w_ref[...], preferred_element_type=jnp.float32)

    @pl.when(k == 0)
    def _init():
        acc_ref[...] = prod

    @pl.when(k > 0)
    def _accum():
        acc_ref[...] += prod

    @pl.when(k == pl.num_programs(1) - 1)
    def _finalize():
        # Padded classes carry a -1e30 bias -> never win the max, exp ~ 0.
        logits = acc_ref[...] + b_ref[...]
        m = jnp.max(logits, axis=1, keepdims=True)
        shifted = logits - m
        lse = jnp.log(jnp.sum(jnp.exp(shifted), axis=1, keepdims=True))
        o_ref[...] = (shifted - lse).astype(o_ref.dtype)


def prepare_classifier(weight, bias, *, compute_dtype="auto",
                       class_pad_multiple=128, vmem_budget_bytes=None):
    """Pad / cast parameters ONCE (hoisted out of the per-call forward).

    weight: [D, C] (transpose of PyTorch nn.Linear.weight), bias: [C].
    compute_dtype: "auto" -> bf16 matmul operands (f32 accumulation) for large
      D, full f32 otherwise; pass None / jnp.float32 / jnp.bfloat16 explicitly
      to override. Bias and log-softmax always stay f32.
    class_pad_multiple: 128 (lane width). Use 256 on v6e/v7x when the matmul
      (not HBM) dominates, to fill the 256-wide MXU in N.
    """
    D, C = weight.shape
    if compute_dtype == "auto":
        compute_dtype = jnp.bfloat16 if D >= 1024 else None
    op_dtype = np.dtype(compute_dtype) if compute_dtype is not None else np.dtype(jnp.float32)

    C_pad = _round_up(C, class_pad_multiple)

    cap = _vmem_capacity_bytes()
    budget = vmem_budget_bytes if vmem_budget_bytes is not None else (3 * cap) // 4

    w_item = op_dtype.itemsize
    if 2 * D * C_pad * w_item <= budget // 2:
        # Resident-weight path: whole weight lives in VMEM, nk == 1.
        nk, tk, d_pad = 1, D, D
    else:
        # K-tiled path: weight tile (TK, C_pad); TK is a multiple of 128 that
        # divides the 128-padded D so there is no ragged-edge handling.
        d_pad = _round_up(D, 128)
        d_lanes = d_pad // 128
        tk_lanes_max = max(1, (budget // 3) // (2 * 128 * C_pad * w_item))
        nk0 = -(-d_lanes // tk_lanes_max)
        nk = next(n for n in range(nk0, d_lanes + 1) if d_lanes % n == 0)
        tk = (d_lanes // nk) * 128

    # Cast BEFORE padding so the padded copy is written in the narrow dtype.
    w_p = weight.astype(op_dtype)
    if d_pad != D or C_pad != C:
        w_p = jnp.pad(w_p, ((0, d_pad - D), (0, C_pad - C)))

    b_p = bias.astype(jnp.float32).reshape(1, C)
    if C_pad != C:
        b_p = jnp.pad(b_p, ((0, 0), (0, C_pad - C)),
                      constant_values=jnp.float32(-1e30))

    return {
        "w": w_p, "b": b_p,
        "input_dim": D, "num_class": C,
        "d_pad": d_pad, "c_pad": C_pad,
        "tk": tk, "nk": nk,
        "op_dtype": op_dtype,
        "vmem_budget": budget,
        "vmem_capacity": cap,
    }


def classifier_forward(features, params, *, block_b=1024, out_dtype=jnp.float32):
    """features: [B, D] -> [B, num_class] log-probabilities."""
    B, D = features.shape
    assert D == params["input_dim"], "feature dim mismatch"
    w_p, b_p = params["w"], params["b"]
    d_pad, c_pad = params["d_pad"], params["c_pad"]
    tk, nk = params["tk"], params["nk"]
    op_dtype = params["op_dtype"]
    budget = params["vmem_budget"]
    cap = params["vmem_capacity"]
    C = params["num_class"]

    x_item = op_dtype.itemsize
    w_item = op_dtype.itemsize
    out_item = np.dtype(out_dtype).itemsize

    # ---- batch tile derived from the VMEM byte budget (assumes dbl-buffered
    #      weight so the Buffered(1) fallback below always fits) ----
    fixed = 2 * tk * c_pad * w_item + 2 * c_pad * 4                  # weight + bias
    per_row = 2 * tk * x_item + 2 * c_pad * out_item + c_pad * 4     # x + out + acc
    tb = max(8, (budget - fixed) // max(per_row, 1))
    tb = min(tb, block_b, _round_up(B, 8))
    tb = max(8, (tb // 8) * 8)

    # >= 2 batch grid steps so the "parallel" axis can span both v7x TCs.
    if -(-B // tb) == 1 and B > 8:
        tb = max(8, _round_up(-(-B // 2), 8))

    nb = -(-B // tb)
    b_pad = nb * tb

    # ---- conditional activation cast / pad (cast BEFORE padding) ----
    x_p = features
    if x_p.dtype != op_dtype:
        x_p = x_p.astype(op_dtype)
    if b_pad != B or d_pad != D:
        x_p = jnp.pad(x_p, ((0, b_pad - B), (0, d_pad - D)))

    vmem_used = fixed + tb * per_row
    vmem_limit = int(min(cap * 0.9,
                         max(vmem_used * 1.25 + (1 << 20), 16 << 20)))

    cost = pl.CostEstimate(
        flops=2 * b_pad * d_pad * c_pad,
        transcendentals=b_pad * c_pad,
        bytes_accessed=(x_p.size * x_item + w_p.size * w_item
                        + b_p.size * 4 + b_pad * c_pad * out_item),
    )

    def build(single_buffer_resident):
        w_kwargs, b_kwargs = {}, {}
        if single_buffer_resident:
            # Constant-index (resident) operands gain nothing from double
            # buffering; a single buffer halves their VMEM footprint.
            b_kwargs = dict(pipeline_mode=pl.Buffered(1))
            if nk == 1:
                w_kwargs = dict(pipeline_mode=pl.Buffered(1))
        return pl.pallas_call(
            classifier_kernel,
            out_shape=jax.ShapeDtypeStruct((b_pad, c_pad), out_dtype),
            grid=(nb, nk),
            in_specs=[
                pl.BlockSpec((tb, tk), lambda i, k: (i, k)),            # x walks (batch, K)
                pl.BlockSpec((tk, c_pad), lambda i, k: (k, 0), **w_kwargs),  # weight
                pl.BlockSpec((1, c_pad), lambda i, k: (0, 0), **b_kwargs),   # bias resident
            ],
            out_specs=pl.BlockSpec((tb, c_pad), lambda i, k: (i, 0)),
            scratch_shapes=[pltpu.VMEM((tb, c_pad), jnp.float32)],
            compiler_params=pltpu.CompilerParams(
                dimension_semantics=("parallel", "arbitrary"),
                vmem_limit_bytes=vmem_limit,
            ),
            cost_estimate=cost,
        )

    try:
        out = build(True)(x_p, w_p, b_p)
    except Exception:
        # jax version without BlockSpec pipeline_mode / Buffered(1): fall back
        # to default double buffering (budget above already accounts for 2x).
        out = build(False)(x_p, w_p, b_p)

    if b_pad != B or c_pad != C:
        out = out[:B, :C]
    return out


def init_params(key, input_dim, num_class):
    # Mirrors weights_init: xavier_uniform_(weight, gain=0.5), bias = 0.
    # PyTorch weight is [num_class, input_dim]; xavier bound uses
    # fan_in=input_dim, fan_out=num_class.
    gain = 0.5
    bound = gain * math.sqrt(6.0 / (input_dim + num_class))
    w_pt = jax.random.uniform(
        key, (num_class, input_dim), dtype=jnp.float32,
        minval=-bound, maxval=bound,
    )
    weight = w_pt.T  # stored as [D, C] for the kernel
    bias = jnp.zeros((num_class,), dtype=jnp.float32)
    return weight, bias


if __name__ == "__main__":
    key = jax.random.PRNGKey(0)
    k_feat, k_w = jax.random.split(key)

    batch = 8
    input_dim = 32
    num_class = 16

    features = jax.random.normal(k_feat, (batch, input_dim), dtype=jnp.float32)
    weight, bias = init_params(k_w, input_dim, num_class)

    # Padding / casting hoisted out of the forward pass (done once here).
    params = prepare_classifier(weight, bias)

    out = classifier_forward(features, params)
    out = jax.block_until_ready(out)

    # sanity check vs. pure-JAX reference
    logits_ref = features @ weight + bias[None, :]
    ref = jax.nn.log_softmax(logits_ref, axis=1)
    assert out.shape == (batch, num_class)
    assert jnp.allclose(out, ref, atol=1e-5, rtol=1e-5)

    print("KERNEL_OK")
</pallas_src>

<mosaic_0001>
module attributes {stable_mosaic.version = 11 : i64} {
  func.func @classifier_kernel(%arg0: i32, %arg1: i32, %arg2: memref<8x32xf32, #tpu.memory_space<vmem>>, %arg3: memref<32x128xf32, #tpu.memory_space<vmem>>, %arg4: memref<1x128xf32, #tpu.memory_space<vmem>>, %arg5: memref<8x128xf32, #tpu.memory_space<vmem>>, %arg6: memref<8x128xf32, #tpu.memory_space<vmem>>) attributes {dimension_semantics = [#tpu.dimension_semantics<parallel>, #tpu.dimension_semantics<arbitrary>], iteration_bounds = array<i64: 1, 1>, scalar_prefetch = 0 : i64, scratch_operands = 1 : i64, tpu.core_type = #tpu.core_type<tc>, window_params = [{transform_indices = @transform_0, window_bounds = array<i64: 8, 32>}, {pipeline_mode = #tpu.pipeline_mode<synchronous>, transform_indices = @transform_1, window_bounds = array<i64: 32, 128>}, {pipeline_mode = #tpu.pipeline_mode<synchronous>, transform_indices = @transform_2, window_bounds = array<i64: 1, 128>}, {transform_indices = @transform_3, window_bounds = array<i64: 8, 128>}]} {
    %c0 = arith.constant 0 : index
    %c0_0 = arith.constant 0 : index
    %0 = vector.load %arg2[%c0, %c0_0] : memref<8x32xf32, #tpu.memory_space<vmem>>, vector<8x32xf32>
    %c0_1 = arith.constant 0 : index
    %c0_2 = arith.constant 0 : index
    %1 = vector.load %arg3[%c0_1, %c0_2] : memref<32x128xf32, #tpu.memory_space<vmem>>, vector<32x128xf32>
    %cst = arith.constant dense<0.000000e+00> : vector<8x128xf32>
    %2 = tpu.matmul %0, %1, %cst {dimension_numbers = #tpu.dot_dimension_numbers<[1], [0], [0], [1], [0, 0, 1, 1], [], []>} : vector<8x32xf32>, vector<32x128xf32>, vector<8x128xf32> -> vector<8x128xf32>
    %c0_i32 = arith.constant 0 : i32
    %3 = arith.cmpi eq, %arg1, %c0_i32 : i32
    %4 = arith.extui %3 : i1 to i32
    %c0_i32_3 = arith.constant 0 : i32
    %5 = arith.cmpi ne, %4, %c0_i32_3 : i32
    scf.if %5 {
      %c0_8 = arith.constant 0 : index
      %c0_9 = arith.constant 0 : index
      %12 = vector.load %arg6[%c0_8, %c0_9] : memref<8x128xf32, #tpu.memory_space<vmem>>, vector<8x128xf32>
      tpu.vector_store %arg6[%c0_8, %c0_9], %2 {strides = array<i32>} : memref<8x128xf32, #tpu.memory_space<vmem>>, vector<8x128xf32>,
    } else {
    }
    %c0_i32_4 = arith.constant 0 : i32
    %6 = arith.cmpi sgt, %arg1, %c0_i32_4 : i32
    %7 = arith.extui %6 : i1 to i32
    %c0_i32_5 = arith.constant 0 : i32
    %8 = arith.cmpi ne, %7, %c0_i32_5 : i32
    scf.if %8 {
      %c0_8 = arith.constant 0 : index
      %c0_9 = arith.constant 0 : index
      %12 = vector.load %arg6[%c0_8, %c0_9] : memref<8x128xf32, #tpu.memory_space<vmem>>, vector<8x128xf32>
      %13 = arith.addf %12, %2 : vector<8x128xf32>
      %c0_10 = arith.constant 0 : index
      %c0_11 = arith.constant 0 : index
      %14 = vector.load %arg6[%c0_10, %c0_11] : memref<8x128xf32, #tpu.memory_space<vmem>>, vector<8x128xf32>
      tpu.vector_store %arg6[%c0_10, %c0_11], %13 {strides = array<i32>} : memref<8x128xf32, #tpu.memory_space<vmem>>, vector<8x128xf32>,
    } else {
    }
    %c0_i32_6 = arith.constant 0 : i32
    %9 = arith.cmpi eq, %arg1, %c0_i32_6 : i32
    %10 = arith.extui %9 : i1 to i32
    %c0_i32_7 = arith.constant 0 : i32
    %11 = arith.cmpi ne, %10, %c0_i32_7 : i32
    scf.if %11 {
      %c0_8 = arith.constant 0 : index
      %c0_9 = arith.constant 0 : index
      %12 = vector.load %arg6[%c0_8, %c0_9] : memref<8x128xf32, #tpu.memory_space<vmem>>, vector<8x128xf32>
      %c0_10 = arith.constant 0 : index
      %c0_11 = arith.constant 0 : index
      %13 = vector.load %arg4[%c0_10, %c0_11] : memref<1x128xf32, #tpu.memory_space<vmem>>, vector<1x128xf32>
      %14 = vector.broadcast %13 : vector<1x128xf32> to vector<8x128xf32>
      %15 = arith.addf %12, %14 : vector<8x128xf32>
      %cst_12 = arith.constant dense<0xFF800000> : vector<8xf32>
      %16 = vector.multi_reduction <maximumf>, %15, %cst_12 [1] : vector<8x128xf32> to vector<8xf32>
      %17 = vector.shape_cast %16 : vector<8xf32> to vector<8x1xf32>
      %18 = vector.broadcast %17 : vector<8x1xf32> to vector<8x128xf32>
      %19 = arith.subf %15, %18 : vector<8x128xf32>
      %20 = math.exp %19 : vector<8x128xf32>
      %cst_13 = arith.constant dense<0.000000e+00> : vector<8xf32>
      %21 = vector.multi_reduction <add>, %20, %cst_13 [1] : vector<8x128xf32> to vector<8xf32>
      %22 = vector.shape_cast %21 : vector<8xf32> to vector<8x1xf32>
      %23 = math.log %22 : vector<8x1xf32>
      %24 = vector.broadcast %23 : vector<8x1xf32> to vector<8x128xf32>
      %25 = arith.subf %19, %24 : vector<8x128xf32>
      %c0_14 = arith.constant 0 : index
      %c0_15 = arith.constant 0 : index
      %26 = vector.load %arg5[%c0_14, %c0_15] : memref<8x128xf32, #tpu.memory_space<vmem>>, vector<8x128xf32>
      tpu.vector_store %arg5[%c0_14, %c0_15], %25 {strides = array<i32>} : memref<8x128xf32, #tpu.memory_space<vmem>>, vector<8x128xf32>,
    } else {
    }
    return
  }
  func.func @transform_0(%arg0: i32, %arg1: i32) -> (i32, i32) {
    %c0_i32 = arith.constant 0 : i32
    return %arg0, %arg1 : i32, i32
  }
  func.func @transform_1(%arg0: i32, %arg1: i32) -> (i32, i32) {
    %c0_i32 = arith.constant 0 : i32
    %c0_i32_0 = arith.constant 0 : i32
    return %arg1, %c0_i32 : i32, i32
  }
  func.func @transform_2(%arg0: i32, %arg1: i32) -> (i32, i32) {
    %c0_i32 = arith.constant 0 : i32
    %c0_i32_0 = arith.constant 0 : i32
    %c0_i32_1 = arith.constant 0 : i32
    return %c0_i32, %c0_i32_0 : i32, i32
  }
  func.func @transform_3(%arg0: i32, %arg1: i32) -> (i32, i32) {
    %c0_i32 = arith.constant 0 : i32
    %c0_i32_0 = arith.constant 0 : i32
    return %arg0, %c0_i32 : i32, i32
  }
}

module attributes {stable_mosaic.version = 11 : i64} {
  func.func @classifier_kernel(%arg0: i32, %arg1: i32, %arg2: memref<8x32xf32, #tpu.memory_space<vmem>>, %arg3: memref<32x128xf32, #tpu.memory_space<vmem>>, %arg4: memref<1x128xf32, #tpu.memory_space<vmem>>, %arg5: memref<8x128xf32, #tpu.memory_space<vmem>>, %arg6: memref<8x128xf32, #tpu.memory_space<vmem>>) attributes {dimension_semantics = [#tpu.dimension_semantics<parallel>, #tpu.dimension_semantics<arbitrary>], iteration_bounds = array<i64: 1, 1>, scalar_prefetch = 0 : i64, scratch_operands = 1 : i64, tpu.core_type = #tpu.core_type<tc>, window_params = [{transform_indices = @transform_0, window_bounds = array<i64: 8, 32>}, {transform_indices = @transform_1, window_bounds = array<i64: 32, 128>}, {pipeline_mode = #tpu.pipeline_mode<synchronous>, transform_indices = @transform_2, window_bounds = array<i64: 1, 128>}, {transform_indices = @transform_3, window_bounds = array<i64: 8, 128>}]} {
    %c0 = arith.constant 0 : index
    %c0_0 = arith.constant 0 : index
    %0 = vector.load %arg2[%c0, %c0_0] : memref<8x32xf32, #tpu.memory_space<vmem>>, vector<8x32xf32>
    %c0_1 = arith.constant 0 : index
    %c0_2 = arith.constant 0 : index
    %1 = vector.load %arg3[%c0_1, %c0_2] : memref<32x128xf32, #tpu.memory_space<vmem>>, vector<32x128xf32>
    %cst = arith.constant dense<0.000000e+00> : vector<8x128xf32>
    %2 = tpu.matmul %0, %1, %cst {dimension_numbers = #tpu.dot_dimension_numbers<[1], [0], [0], [1], [0, 0, 1, 1], [], []>} : vector<8x32xf32>, vector<32x128xf32>, vector<8x128xf32> -> vector<8x128xf32>
    %c0_i32 = arith.constant 0 : i32
    %3 = arith.cmpi eq, %arg1, %c0_i32 : i32
    %4 = arith.extui %3 : i1 to i32
    %c0_i32_3 = arith.constant 0 : i32
    %5 = arith.cmpi ne, %4, %c0_i32_3 : i32
    scf.if %5 {
      %c0_8 = arith.constant 0 : index
      %c0_9 = arith.constant 0 : index
      %12 = vector.load %arg6[%c0_8, %c0_9] : memref<8x128xf32, #tpu.memory_space<vmem>>, vector<8x128xf32>
      tpu.vector_store %arg6[%c0_8, %c0_9], %2 {strides = array<i32>} : memref<8x128xf32, #tpu.memory_space<vmem>>, vector<8x128xf32>,
    } else {
    }
    %c0_i32_4 = arith.constant 0 : i32
    %6 = arith.cmpi sgt, %arg1, %c0_i32_4 : i32
    %7 = arith.extui %6 : i1 to i32
    %c0_i32_5 = arith.constant 0 : i32
    %8 = arith.cmpi ne, %7, %c0_i32_5 : i32
    scf.if %8 {
      %c0_8 = arith.constant 0 : index
      %c0_9 = arith.constant 0 : index
      %12 = vector.load %arg6[%c0_8, %c0_9] : memref<8x128xf32, #tpu.memory_space<vmem>>, vector<8x128xf32>
      %13 = arith.addf %12, %2 : vector<8x128xf32>
      %c0_10 = arith.constant 0 : index
      %c0_11 = arith.constant 0 : index
      %14 = vector.load %arg6[%c0_10, %c0_11] : memref<8x128xf32, #tpu.memory_space<vmem>>, vector<8x128xf32>
      tpu.vector_store %arg6[%c0_10, %c0_11], %13 {strides = array<i32>} : memref<8x128xf32, #tpu.memory_space<vmem>>, vector<8x128xf32>,
    } else {
    }
    %c0_i32_6 = arith.constant 0 : i32
    %9 = arith.cmpi eq, %arg1, %c0_i32_6 : i32
    %10 = arith.extui %9 : i1 to i32
    %c0_i32_7 = arith.constant 0 : i32
    %11 = arith.cmpi ne, %10, %c0_i32_7 : i32
    scf.if %11 {
      %c0_8 = arith.constant 0 : index
      %c0_9 = arith.constant 0 : index
      %12 = vector.load %arg6[%c0_8, %c0_9] : memref<8x128xf32, #tpu.memory_space<vmem>>, vector<8x128xf32>
      %c0_10 = arith.constant 0 : index
      %c0_11 = arith.constant 0 : index
      %13 = vector.load %arg4[%c0_10, %c0_11] : memref<1x128xf32, #tpu.memory_space<vmem>>, vector<1x128xf32>
      %14 = vector.broadcast %13 : vector<1x128xf32> to vector<8x128xf32>
      %15 = arith.addf %12, %14 : vector<8x128xf32>
      %cst_12 = arith.constant dense<0xFF800000> : vector<8xf32>
      %16 = vector.multi_reduction <maximumf>, %15, %cst_12 [1] : vector<8x128xf32> to vector<8xf32>
      %17 = vector.shape_cast %16 : vector<8xf32> to vector<8x1xf32>
      %18 = vector.broadcast %17 : vector<8x1xf32> to vector<8x128xf32>
      %19 = arith.subf %15, %18 : vector<8x128xf32>
      %20 = math.exp %19 : vector<8x128xf32>
      %cst_13 = arith.constant dense<0.000000e+00> : vector<8xf32>
      %21 = vector.multi_reduction <add>, %20, %cst_13 [1] : vector<8x128xf32> to vector<8xf32>
      %22 = vector.shape_cast %21 : vector<8xf32> to vector<8x1xf32>
      %23 = math.log %22 : vector<8x1xf32>
      %24 = vector.broadcast %23 : vector<8x1xf32> to vector<8x128xf32>
      %25 = arith.subf %19, %24 : vector<8x128xf32>
      %c0_14 = arith.constant 0 : index
      %c0_15 = arith.constant 0 : index
      %26 = vector.load %arg5[%c0_14, %c0_15] : memref<8x128xf32, #tpu.memory_space<vmem>>, vector<8x128xf32>
      tpu.vector_store %arg5[%c0_14, %c0_15], %25 {strides = array<i32>} : memref<8x128xf32, #tpu.memory_space<vmem>>, vector<8x128xf32>,
    } else {
    }
    return
  }
  func.func @transform_0(%arg0: i32, %arg1: i32) -> (i32, i32) {
    %c0_i32 = arith.constant 0 : i32
    return %arg0, %arg1 : i32, i32
  }
  func.func @transform_1(%arg0: i32, %arg1: i32) -> (i32, i32) {
    %c0_i32 = arith.constant 0 : i32
    %c0_i32_0 = arith.constant 0 : i32
    return %arg1, %c0_i32 : i32, i32
  }
  func.func @transform_2(%arg0: i32, %arg1: i32) -> (i32, i32) {
    %c0_i32 = arith.constant 0 : i32
    %c0_i32_0 = arith.constant 0 : i32
    %c0_i32_1 = arith.constant 0 : i32
    return %c0_i32, %c0_i32_0 : i32, i32
  }
  func.func @transform_3(%arg0: i32, %arg1: i32) -> (i32, i32) {
    %c0_i32 = arith.constant 0 : i32
    %c0_i32_0 = arith.constant 0 : i32
    return %arg0, %c0_i32 : i32, i32
  }
}

</mosaic_0001>

<llo_original>
// kernel: tpu_custom_call.1
$region0: #{tpu_custom_call.1}
  #allocation0 [shape = 'u32[]', space=smem, size = 0x4, offset = 0x4, fixed_abs, tag = 'smem constant byte address 0x4 - core index']
  #allocation1 [shape = 'u32[72,128]{1,0:T(1,128)}', space=vmem, size = 0x9000, scoped, tag = 'internal scratch']
  #allocation2 [shape = 'f32[8,128]{1,0:T(8,128)}', space=vmem, size = 0x1000, scoped, tag = 'scratch operand']
  %s0 = inlined_call_operand.hbm [shape: f32[8,32], index: 0, kind: input, shape index: {}]
  %s1 = inlined_call_operand.hbm [shape: f32[32,128], index: 1, kind: input, shape index: {}]
  %s2 = inlined_call_operand.vmem [shape: f32[1,128], index: 2, kind: input, shape index: {}]
  %s3 = inlined_call_operand.hbm [shape: f32[8,128], index: 3, kind: output, shape index: {}]
  %s4 = sld [smem:[#allocation0]]
  $region42: #{tpu_custom_call.1} parent=0
    _
  %s6 = ssub.s32 1, %s4
  %s7 = scalar_select 0, %s6, %s4
  $region1: #{tpu_custom_call.1} parent=0
    #allocation3 [shape = 'u8[4096]{0}', space=vmem, size = 0x1000, scoped, tag = 'input window, operand 0, single buffered']
    #allocation4 [shape = 's32[1]{0}', space=sflag, size = 0x4, scoped, tag = 'scoped memory for tpu_custom_call.1']
    #allocation5 [shape = 's32[1]{0}', space=sflag, size = 0x4, scoped, tag = 'scoped memory for tpu_custom_call.1']
    #allocation6 [shape = 'u8[16384]{0}', space=vmem, size = 0x4000, scoped, tag = 'input window, operand 1, single buffered']
    #allocation7 [shape = 's32[1]{0}', space=sflag, size = 0x4, scoped, tag = 'scoped memory for tpu_custom_call.1']
    #allocation8 [shape = 'u8[4096]{0}', space=vmem, size = 0x1000, scoped, tag = 'output window, operand 0, single buffered']
    %8 = vsyncpa [#allocation4], 0
    %9 = vsyncpa [#allocation7], 0
    %10 = vsyncpa [#allocation5], 0
    // Predicated region
    $region2: #{tpu_custom_call.1} parent=1 // pred_check
      _
    $region3: #{tpu_custom_call.1} parent=1 // pred_check_branch
      %12 = sbr.rel (0) target = $region5
    $region4: #{tpu_custom_call.1} parent=1 // pred_region
      %14 = vsyncadd [#allocation4], 0
      %s16 = sshll.u32 %s0, 4
      %s17 = int_to_ptr.hbm [resolvable:$true] %s16
      %s18 = sshll.u32 [#allocation3], 4
      %s19 = int_to_ptr.vmem [resolvable:$true] %s18
      %21 = dma.hbm_to_vmem [thread:$0]  %s17, 128, %s19, [#allocation4]
    $region5: #{tpu_custom_call.1} parent=1 // pred_fallthru
      _
    // Predicated region
    $region6: #{tpu_custom_call.1} parent=1 // pred_check
      _
    $region7: #{tpu_custom_call.1} parent=1 // pred_check_branch
      %23 = sbr.rel (0) target = $region9
    $region8: #{tpu_custom_call.1} parent=1 // pred_region
      %25 = vsyncadd [#allocation7], 0
      %s26 = sshll.u32 %s1, 4
      %s27 = int_to_ptr.hbm [resolvable:$true] %s26
      %s28 = sshll.u32 [#allocation6], 4
      %s29 = int_to_ptr.vmem [resolvable:$true] %s28
      %34 = dma.hbm_to_vmem [thread:$0]  %s27, 512, %s29, [#allocation7], 128, 128, 8
    $region9: #{tpu_custom_call.1} parent=1 // pred_fallthru
      _
    // Predicated region
    $region10: #{tpu_custom_call.1} parent=1 // pred_check
      _
    $region11: #{tpu_custom_call.1} parent=1 // pred_check_branch
      %36 = sbr.rel (0) target = $region13
    $region12: #{tpu_custom_call.1} parent=1 // pred_region
      _
    $region13: #{tpu_custom_call.1} parent=1 // pred_fallthru
      _
    // Predicated region
    $region14: #{tpu_custom_call.1} parent=1 // pred_check
      _
    $region15: #{tpu_custom_call.1} parent=1 // pred_check_branch
      %38 = sbr.rel (0) target = $region17
    $region16: #{tpu_custom_call.1} parent=1 // pred_region
      %40 = dma.done [#allocation4], 128
    $region17: #{tpu_custom_call.1} parent=1 // pred_fallthru
      _
    // Predicated region
    $region18: #{tpu_custom_call.1} parent=1 // pred_check
      _
    $region19: #{tpu_custom_call.1} parent=1 // pred_check_branch
      %42 = sbr.rel (0) target = $region21
    $region20: #{tpu_custom_call.1} parent=1 // pred_region
      %44 = dma.done [#allocation7], 512
    $region21: #{tpu_custom_call.1} parent=1 // pred_fallthru
      _
    %v45 = vld [vmem:[#allocation3] sm:$0xff]
    %v46 = vld [vmem:[#allocation6] sm:$0xff]
    %v47 = vld [vmem:[#allocation6 + $0x8] sm:$0xff]
    %v48 = vld [vmem:[#allocation6 + $0x10] sm:$0xff]
    %v49 = vld [vmem:[#allocation6 + $0x18] sm:$0xff]
    %vm50 = vcmask 261120
    %v52 = vsel %vm50, %v45, 0
    %54 = vmatpush.msra.mxu0 0.0
    %55 = vmatpush.msra.mxu0 0.0
    %56 = vmatpush.msra.mxu0 0.0
    %57 = vmatpush.msra.mxu0 0.0
    %58 = vmatpush.msra.mxu0 0.0
    %59 = vmatpush.msra.mxu0 0.0
    %60 = vmatpush.msra.mxu0 0.0
    %61 = vmatpush.msra.mxu0 0.0
    %62 = vmatpush.msra.mxu0 0.0
    %63 = vmatpush.msra.mxu0 0.0
    %64 = vmatpush.msra.mxu0 0.0
    %65 = vmatpush.msra.mxu0 0.0
    %66 = vmatpush.msra.mxu0 %v49
    %67 = vmatpush.msra.mxu0 %v48
    %68 = vmatpush.msra.mxu0 %v47
    %69 = vmatpush.msra.mxu0 %v46
    %70 = vmatmul.f32.gmra.mxu0 %v52
    %v71 = vpop.f32.mrf.mxu0
    %v72 = vadd.f32 0.0, %v71
    %73 = vdwg.mxu0
    %p74 = scmp.eq.s32.totalorder 0, 0
    // Predicated region
    $region22: #{tpu_custom_call.1} parent=1 // pred_check
      %p75 = pneg %p74
    $region23: #{tpu_custom_call.1} parent=1 // pred_check_branch
      %77 = sbr.rel (%p75) target = $region25
    $region24: #{tpu_custom_call.1} parent=1 // pred_region
      %78 = vst [vmem:[#allocation2] sm:$0xff] %v72
    $region25: #{tpu_custom_call.1} parent=1 // pred_fallthru
      _
    %p79 = scmp.gt.s32.totalorder 0, 0
    // Predicated region
    $region26: #{tpu_custom_call.1} parent=1 // pred_check
      %p80 = pneg %p79
    $region27: #{tpu_custom_call.1} parent=1 // pred_check_branch
      %82 = sbr.rel (%p80) target = $region29
    $region28: #{tpu_custom_call.1} parent=1 // pred_region
      %v83 = vld [vmem:[#allocation2] sm:$0xff]
      %v84 = vadd.f32 %v83, %v72
      %85 = vst [vmem:[#allocation2] sm:$0xff] %v84
    $region29: #{tpu_custom_call.1} parent=1 // pred_fallthru
      _
    // Predicated region
    $region30: #{tpu_custom_call.1} parent=1 // pred_check
      %p86 = pneg %p74
    $region31: #{tpu_custom_call.1} parent=1 // pred_check_branch
      %88 = sbr.rel (%p86) target = $region33
    $region32: #{tpu_custom_call.1} parent=1 // pred_region
      %v89 = vld [vmem:[#allocation2] sm:$0xff]
      %v90 = vld [vmem:[%s2] sm:$0x1]
      %v92 = vperm.slane %v90, 0
      %v94 = vadd.f32 %v89, %v92
      %95 = vmax.xlane.f32.xlu0 %v94
      %v96 = vpop.xlane.xlu0 %95
      %v97 = vsub.f32 %v94, %v96
      %v98 = vmul.f32 %v97, 1.442695
      %v99 = vpow.pop %v98
      %100 = vadd.xlane.f32.xlu0 %v99
      %v101 = vpop.xlane.xlu0 %100
      %v102 = vlog2.pop %v101
      %v103 = vmul.f32 %v102, 0.6931472
      %v104 = vsub.f32 %v97, %v103
      %105 = vst [vmem:[#allocation8] sm:$0xff] %v104
    $region33: #{tpu_custom_call.1} parent=1 // pred_fallthru
      _
    // Predicated region
    $region34: #{tpu_custom_call.1} parent=1 // pred_check
      _
    $region35: #{tpu_custom_call.1} parent=1 // pred_check_branch
      %107 = sbr.rel (0) target = $region37
    $region36: #{tpu_custom_call.1} parent=1 // pred_region
      %109 = vsyncadd [#allocation5], 0
      %s111 = sshll.u32 [#allocation8], 4
      %s112 = int_to_ptr.vmem [resolvable:$true] %s111
      %s113 = sshll.u32 %s3, 4
      %s114 = int_to_ptr.hbm [resolvable:$true] %s113
      %116 = dma.vmem_to_hbm [thread:$0]  %s112, 128, %s114, [#allocation5]
    $region37: #{tpu_custom_call.1} parent=1 // pred_fallthru
      _
    // Predicated region
    $region38: #{tpu_custom_call.1} parent=1 // pred_check
      _
    $region39: #{tpu_custom_call.1} parent=1 // pred_check_branch
      %118 = sbr.rel (0) target = $region41
    $region40: #{tpu_custom_call.1} parent=1 // pred_region
      %120 = dma.done [#allocation5], 128
    $region41: #{tpu_custom_call.1} parent=1 // pred_fallthru
      _
    %121 = vsyncpa [#allocation4], 1
    %122 = vsyncpa [#allocation7], 1
    %123 = vsyncpa [#allocation5], 1

// kernel: tpu_custom_call.1
$region0: #{tpu_custom_call.1}
  #allocation0 [shape = 'u32[]', space=smem, size = 0x4, offset = 0x4, fixed_abs, tag = 'smem constant byte address 0x4 - core index']
  #allocation1 [shape = 'u32[72,128]{1,0:T(1,128)}', space=vmem, size = 0x9000, scoped, tag = 'internal scratch']
  #allocation2 [shape = 'f32[8,128]{1,0:T(8,128)}', space=vmem, size = 0x1000, scoped, tag = 'scratch operand']
  %s0 = inlined_call_operand.hbm [shape: f32[8,32], index: 0, kind: input, shape index: {}]
  %s1 = inlined_call_operand.hbm [shape: f32[32,128], index: 1, kind: input, shape index: {}]
  %s2 = inlined_call_operand.vmem [shape: f32[1,128], index: 2, kind: input, shape index: {}]
  %s3 = inlined_call_operand.hbm [shape: f32[8,128], index: 3, kind: output, shape index: {}]
  %s4 = sld [smem:[#allocation0]]
  $region42: #{tpu_custom_call.1} parent=0
    _
  %s6 = ssub.s32 1, %s4
  %s7 = scalar_select 0, %s6, %s4
  $region1: #{tpu_custom_call.1} parent=0
    #allocation3 [shape = 'u8[4096]{0}', space=vmem, size = 0x1000, scoped, tag = 'input window, operand 0, single buffered']
    #allocation4 [shape = 's32[1]{0}', space=sflag, size = 0x4, scoped, tag = 'scoped memory for tpu_custom_call.1']
    #allocation5 [shape = 's32[1]{0}', space=sflag, size = 0x4, scoped, tag = 'scoped memory for tpu_custom_call.1']
    #allocation6 [shape = 'u8[16384]{0}', space=vmem, size = 0x4000, scoped, tag = 'input window, operand 1, single buffered']
    #allocation7 [shape = 's32[1]{0}', space=sflag, size = 0x4, scoped, tag = 'scoped memory for tpu_custom_call.1']
    #allocation8 [shape = 'u8[4096]{0}', space=vmem, size = 0x1000, scoped, tag = 'output window, operand 0, single buffered']
    %8 = vsyncpa [#allocation4], 0
    %9 = vsyncpa [#allocation7], 0
    %10 = vsyncpa [#allocation5], 0
    // Predicated region
    $region2: #{tpu_custom_call.1} parent=1 // pred_check
      _
    $region3: #{tpu_custom_call.1} parent=1 // pred_check_branch
      %12 = sbr.rel (0) target = $region5
    $region4: #{tpu_custom_call.1} parent=1 // pred_region
      %14 = vsyncadd [#allocation4], 0
      %s16 = sshll.u32 %s0, 4
      %s17 = int_to_ptr.hbm [resolvable:$true] %s16
      %s18 = sshll.u32 [#allocation3], 4
      %s19 = int_to_ptr.vmem [resolvable:$true] %s18
      %21 = dma.hbm_to_vmem [thread:$0]  %s17, 128, %s19, [#allocation4]
    $region5: #{tpu_custom_call.1} parent=1 // pred_fallthru
      _
    // Predicated region
    $region6: #{tpu_custom_call.1} parent=1 // pred_check
      _
    $region7: #{tpu_custom_call.1} parent=1 // pred_check_branch
      %23 = sbr.rel (0) target = $region9
    $region8: #{tpu_custom_call.1} parent=1 // pred_region
      %25 = vsyncadd [#allocation7], 0
      %s26 = sshll.u32 %s1, 4
      %s27 = int_to_ptr.hbm [resolvable:$true] %s26
      %s28 = sshll.u32 [#allocation6], 4
      %s29 = int_to_ptr.vmem [resolvable:$true] %s28
      %34 = dma.hbm_to_vmem [thread:$0]  %s27, 512, %s29, [#allocation7], 128, 128, 8
    $region9: #{tpu_custom_call.1} parent=1 // pred_fallthru
      _
    // Predicated region
    $region10: #{tpu_custom_call.1} parent=1 // pred_check
      _
    $region11: #{tpu_custom_call.1} parent=1 // pred_check_branch
      %36 = sbr.rel (0) target = $region13
    $region12: #{tpu_custom_call.1} parent=1 // pred_region
      _
    $region13: #{tpu_custom_call.1} parent=1 // pred_fallthru
      _
    // Predicated region
    $region14: #{tpu_custom_call.1} parent=1 // pred_check
      _
    $region15: #{tpu_custom_call.1} parent=1 // pred_check_branch
      %38 = sbr.rel (0) target = $region17
    $region16: #{tpu_custom_call.1} parent=1 // pred_region
      %40 = dma.done [#allocation4], 128
    $region17: #{tpu_custom_call.1} parent=1 // pred_fallthru
      _
    // Predicated region
    $region18: #{tpu_custom_call.1} parent=1 // pred_check
      _
    $region19: #{tpu_custom_call.1} parent=1 // pred_check_branch
      %42 = sbr.rel (0) target = $region21
    $region20: #{tpu_custom_call.1} parent=1 // pred_region
      %44 = dma.done [#allocation7], 512
    $region21: #{tpu_custom_call.1} parent=1 // pred_fallthru
      _
    %v45 = vld [vmem:[#allocation3] sm:$0xff]
    %v46 = vld [vmem:[#allocation6] sm:$0xff]
    %v47 = vld [vmem:[#allocation6 + $0x8] sm:$0xff]
    %v48 = vld [vmem:[#allocation6 + $0x10] sm:$0xff]
    %v49 = vld [vmem:[#allocation6 + $0x18] sm:$0xff]
    %vm50 = vcmask 261120
    %v52 = vsel %vm50, %v45, 0
    %54 = vmatpush.msra.mxu0 0.0
    %55 = vmatpush.msra.mxu0 0.0
    %56 = vmatpush.msra.mxu0 0.0
    %57 = vmatpush.msra.mxu0 0.0
    %58 = vmatpush.msra.mxu0 0.0
    %59 = vmatpush.msra.mxu0 0.0
    %60 = vmatpush.msra.mxu0 0.0
    %61 = vmatpush.msra.mxu0 0.0
    %62 = vmatpush.msra.mxu0 0.0
    %63 = vmatpush.msra.mxu0 0.0
    %64 = vmatpush.msra.mxu0 0.0
    %65 = vmatpush.msra.mxu0 0.0
    %66 = vmatpush.msra.mxu0 %v49
    %67 = vmatpush.msra.mxu0 %v48
    %68 = vmatpush.msra.mxu0 %v47
    %69 = vmatpush.msra.mxu0 %v46
    %70 = vmatmul.f32.gmra.mxu0 %v52
    %v71 = vpop.f32.mrf.mxu0
    %v72 = vadd.f32 0.0, %v71
    %73 = vdwg.mxu0
    %p74 = scmp.eq.s32.totalorder 0, 0
    // Predicated region
    $region22: #{tpu_custom_call.1} parent=1 // pred_check
      %p75 = pneg %p74
    $region23: #{tpu_custom_call.1} parent=1 // pred_check_branch
      %77 = sbr.rel (%p75) target = $region25
    $region24: #{tpu_custom_call.1} parent=1 // pred_region
      %78 = vst [vmem:[#allocation2] sm:$0xff] %v72
    $region25: #{tpu_custom_call.1} parent=1 // pred_fallthru
      _
    %p79 = scmp.gt.s32.totalorder 0, 0
    // Predicated region
    $region26: #{tpu_custom_call.1} parent=1 // pred_check
      %p80 = pneg %p79
    $region27: #{tpu_custom_call.1} parent=1 // pred_check_branch
      %82 = sbr.rel (%p80) target = $region29
    $region28: #{tpu_custom_call.1} parent=1 // pred_region
      %v83 = vld [vmem:[#allocation2] sm:$0xff]
      %v84 = vadd.f32 %v83, %v72
      %85 = vst [vmem:[#allocation2] sm:$0xff] %v84
    $region29: #{tpu_custom_call.1} parent=1 // pred_fallthru
      _
    // Predicated region
    $region30: #{tpu_custom_call.1} parent=1 // pred_check
      %p86 = pneg %p74
    $region31: #{tpu_custom_call.1} parent=1 // pred_check_branch
      %88 = sbr.rel (%p86) target = $region33
    $region32: #{tpu_custom_call.1} parent=1 // pred_region
      %v89 = vld [vmem:[#allocation2] sm:$0xff]
      %v90 = vld [vmem:[%s2] sm:$0x1]
      %v92 = vperm.slane %v90, 0
      %v94 = vadd.f32 %v89, %v92
      %95 = vmax.xlane.f32.xlu0 %v94
      %v96 = vpop.xlane.xlu0 %95
      %v97 = vsub.f32 %v94, %v96
      %v98 = vmul.f32 %v97, 1.442695
      %v99 = vpow.pop %v98
      %100 = vadd.xlane.f32.xlu0 %v99
      %v101 = vpop.xlane.xlu0 %100
      %v102 = vlog2.pop %v101
      %v103 = vmul.f32 %v102, 0.6931472
      %v104 = vsub.f32 %v97, %v103
      %105 = vst [vmem:[#allocation8] sm:$0xff] %v104
    $region33: #{tpu_custom_call.1} parent=1 // pred_fallthru
      _
    // Predicated region
    $region34: #{tpu_custom_call.1} parent=1 // pred_check
      _
    $region35: #{tpu_custom_call.1} parent=1 // pred_check_branch
      %107 = sbr.rel (0) target = $region37
    $region36: #{tpu_custom_call.1} parent=1 // pred_region
      %109 = vsyncadd [#allocation5], 0
      %s111 = sshll.u32 [#allocation8], 4
      %s112 = int_to_ptr.vmem [resolvable:$true] %s111
      %s113 = sshll.u32 %s3, 4
      %s114 = int_to_ptr.hbm [resolvable:$true] %s113
      %116 = dma.vmem_to_hbm [thread:$0]  %s112, 128, %s114, [#allocation5]
    $region37: #{tpu_custom_call.1} parent=1 // pred_fallthru
      _
    // Predicated region
    $region38: #{tpu_custom_call.1} parent=1 // pred_check
      _
    $region39: #{tpu_custom_call.1} parent=1 // pred_check_branch
      %118 = sbr.rel (0) target = $region41
    $region40: #{tpu_custom_call.1} parent=1 // pred_region
      %120 = dma.done [#allocation5], 128
    $region41: #{tpu_custom_call.1} parent=1 // pred_fallthru
      _
    %121 = vsyncpa [#allocation4], 1
    %122 = vsyncpa [#allocation7], 1
    %123 = vsyncpa [#allocation5], 1

</llo_original>
